<compile_context>
chip_gen: v7x
topology: tpu7x:2x2x1
jax: 0.10.0
libtpu: 0.0.40
codegen_flags: <defaults>
</compile_context>

<pallas_src>
import functools

import jax
import jax.numpy as jnp
from jax.experimental import pallas as pl
from jax.experimental.pallas import tpu as pltpu

SUBLANE = 8                            # f32 sublane (second-to-last-dim tiling unit)
VMEM_TILE_BUDGET = 24 * 1024 * 1024    # budget for streamed tiles (v7x-safe)


def _round_up(n, m):
    return ((n + m - 1) // m) * m


def _linear_tanh_kernel(x_ref, w1_ref, b1_ref, w2_ref, b2_ref, o_ref):
    # Up-cast immediately so the epilogue (bias add + tanh) runs in f32 on every
    # generation (v5e VPU/EUP have no bf16); MXU matmuls accumulate in f32.
    x = x_ref[...].astype(jnp.float32)
    f1 = jnp.tanh(
        jnp.dot(x, w1_ref[...], preferred_element_type=jnp.float32) + b1_ref[...]
    )
    f2 = jnp.tanh(
        jnp.dot(f1, w2_ref[...], preferred_element_type=jnp.float32) + b2_ref[...]
    )
    o_ref[...] = f2.astype(o_ref.dtype)


@functools.partial(jax.jit, static_argnames=("tile_b", "bf16_stream"))
def linear_tanh_forward(x, w1, b1, w2, b2, *, tile_b=1024, bf16_stream=False):
    """x: (B, D_in); w1: (D_in, H1); b1: (1, H1); w2: (H1, H2); b2: (1, H2)."""
    B, D_in = x.shape
    H1 = w1.shape[1]
    H2 = w2.shape[1]

    # ---- balanced, sublane-aligned batch tile --------------------------------
    n_steps = max(1, pl.cdiv(B, tile_b))
    if n_steps == 1 and B > 2 * SUBLANE:
        n_steps = 2                      # >= 2 grid steps -> both v7x TCs busy
    tb = max(SUBLANE, _round_up(pl.cdiv(B, n_steps), SUBLANE))

    # Clamp tb so the double-buffered streamed tiles (x in, out) plus the f32
    # hidden activations fit comfortably in VMEM on every generation.
    in_bytes = 2 if bf16_stream else 4
    row_bytes = 2 * (in_bytes * D_in + 4 * H2) + 4 * H1
    max_tb = max(SUBLANE, (VMEM_TILE_BUDGET // max(row_bytes, 1)) // SUBLANE * SUBLANE)
    tb = min(tb, max_tb)

    Bp = _round_up(B, tb)
    grid = (Bp // tb,)

    xs = x.astype(jnp.bfloat16) if bf16_stream else x
    if Bp != B:
        xs = jnp.pad(xs, ((0, Bp - B), (0, 0)))   # only when a ragged tail exists

    weight_bytes = 4 * (D_in * H1 + H1 + H1 * H2 + H2)
    vmem_need = tb * row_bytes + 2 * weight_bytes
    vmem_limit = int(min(64 * 1024 * 1024, max(2 * vmem_need, 32 * 1024 * 1024)))

    cost = pl.CostEstimate(
        flops=int(2 * Bp * (D_in * H1 + H1 * H2)),
        transcendentals=int(Bp * (H1 + H2)),
        bytes_accessed=int(in_bytes * Bp * D_in + 4 * Bp * H2 + weight_bytes),
    )

    out = pl.pallas_call(
        _linear_tanh_kernel,
        out_shape=jax.ShapeDtypeStruct((Bp, H2), jnp.float32),
        grid=grid,
        in_specs=[
            pl.BlockSpec((tb, D_in), lambda i: (i, 0)),   # x: streamed per tile
            pl.BlockSpec((D_in, H1), lambda i: (0, 0)),   # w1: resident
            pl.BlockSpec((1, H1), lambda i: (0, 0)),      # b1: resident
            pl.BlockSpec((H1, H2), lambda i: (0, 0)),     # w2: resident
            pl.BlockSpec((1, H2), lambda i: (0, 0)),      # b2: resident
        ],
        out_specs=pl.BlockSpec((tb, H2), lambda i: (i, 0)),  # logical width
        compiler_params=pltpu.CompilerParams(
            dimension_semantics=("parallel",),
            vmem_limit_bytes=vmem_limit,
        ),
        cost_estimate=cost,
    )(xs, w1, b1, w2, b2)

    return out if Bp == B else out[:B]


def init_params(key, input_dim, hidden_dims=(32, 32)):
    """Deterministic init mimicking torch.nn.Linear default (U(-1/sqrt(fan_in), +))."""
    h1, h2 = hidden_dims
    k1, k2, k3, k4 = jax.random.split(key, 4)
    bound1 = 1.0 / jnp.sqrt(jnp.float32(input_dim))
    bound2 = 1.0 / jnp.sqrt(jnp.float32(h1))
    # stored already transposed: (in, out)
    w1 = jax.random.uniform(k1, (input_dim, h1), jnp.float32, -bound1, bound1)
    b1 = jax.random.uniform(k2, (1, h1), jnp.float32, -bound1, bound1)
    w2 = jax.random.uniform(k3, (h1, h2), jnp.float32, -bound2, bound2)
    b2 = jax.random.uniform(k4, (1, h2), jnp.float32, -bound2, bound2)
    return w1, b1, w2, b2


if __name__ == "__main__":
    key = jax.random.PRNGKey(0)
    k_x, k_p, k_x2, k_x3 = jax.random.split(key, 4)

    batch, input_dim = 4, 8          # input_dims=[8]
    hidden_dims = (32, 32)           # hidden_dims=[32, 32]

    x = jax.random.normal(k_x, (batch, input_dim), jnp.float32)
    w1, b1, w2, b2 = init_params(k_p, input_dim, hidden_dims)

    def ref_fwd(xx):
        return jnp.tanh(jnp.tanh(xx @ w1 + b1) @ w2 + b2)

    # Small batch (single grid step, padded to one sublane row group).
    out = jax.block_until_ready(linear_tanh_forward(x, w1, b1, w2, b2))
    assert out.shape == (batch, hidden_dims[1])
    assert jnp.allclose(out, ref_fwd(x), atol=1e-5, rtol=1e-5)

    # Ragged batch exercising a multi-step grid + tail padding.
    x2 = jax.random.normal(k_x2, (20, input_dim), jnp.float32)
    out2 = jax.block_until_ready(linear_tanh_forward(x2, w1, b1, w2, b2, tile_b=8))
    assert out2.shape == (20, hidden_dims[1])
    assert jnp.allclose(out2, ref_fwd(x2), atol=1e-5, rtol=1e-5)

    # Larger batch: balanced tiles, >= 2 grid steps so both v7x cores get work.
    x3 = jax.random.normal(k_x3, (600, input_dim), jnp.float32)
    out3 = jax.block_until_ready(linear_tanh_forward(x3, w1, b1, w2, b2))
    assert out3.shape == (600, hidden_dims[1])
    assert jnp.allclose(out3, ref_fwd(x3), atol=1e-5, rtol=1e-5)

    # Optional bf16 input streaming path (looser tolerance: x quantized to bf16).
    out3b = jax.block_until_ready(
        linear_tanh_forward(x3, w1, b1, w2, b2, bf16_stream=True))
    assert out3b.shape == (600, hidden_dims[1])
    assert jnp.allclose(out3b, ref_fwd(x3), atol=5e-2)

    print("KERNEL_OK")
</pallas_src>

<mosaic_0001>
module attributes {stable_mosaic.version = 11 : i64} {
  func.func @_linear_tanh_kernel(%arg0: i32, %arg1: memref<8x8xf32, #tpu.memory_space<vmem>>, %arg2: memref<8x32xf32, #tpu.memory_space<vmem>>, %arg3: memref<1x32xf32, #tpu.memory_space<vmem>>, %arg4: memref<32x32xf32, #tpu.memory_space<vmem>>, %arg5: memref<1x32xf32, #tpu.memory_space<vmem>>, %arg6: memref<8x32xf32, #tpu.memory_space<vmem>>) attributes {dimension_semantics = [#tpu.dimension_semantics<parallel>], iteration_bounds = array<i64: 1>, scalar_prefetch = 0 : i64, scratch_operands = 0 : i64, tpu.core_type = #tpu.core_type<tc>, window_params = [{transform_indices = @transform_0, window_bounds = array<i64: 8, 8>}, {pipeline_mode = #tpu.pipeline_mode<synchronous>, transform_indices = @transform_1, window_bounds = array<i64: 8, 32>}, {pipeline_mode = #tpu.pipeline_mode<synchronous>, transform_indices = @transform_2, window_bounds = array<i64: 1, 32>}, {pipeline_mode = #tpu.pipeline_mode<synchronous>, transform_indices = @transform_3, window_bounds = array<i64: 32, 32>}, {pipeline_mode = #tpu.pipeline_mode<synchronous>, transform_indices = @transform_4, window_bounds = array<i64: 1, 32>}, {transform_indices = @transform_5, window_bounds = array<i64: 8, 32>}]} {
    %c0 = arith.constant 0 : index
    %c0_0 = arith.constant 0 : index
    %0 = vector.load %arg1[%c0, %c0_0] : memref<8x8xf32, #tpu.memory_space<vmem>>, vector<8x8xf32>
    %c0_1 = arith.constant 0 : index
    %c0_2 = arith.constant 0 : index
    %1 = vector.load %arg2[%c0_1, %c0_2] : memref<8x32xf32, #tpu.memory_space<vmem>>, vector<8x32xf32>
    %cst = arith.constant dense<0.000000e+00> : vector<8x32xf32>
    %2 = tpu.matmul %0, %1, %cst {dimension_numbers = #tpu.dot_dimension_numbers<[1], [0], [0], [1], [0, 0, 1, 1], [], []>} : vector<8x8xf32>, vector<8x32xf32>, vector<8x32xf32> -> vector<8x32xf32>
    %c0_3 = arith.constant 0 : index
    %c0_4 = arith.constant 0 : index
    %3 = vector.load %arg3[%c0_3, %c0_4] : memref<1x32xf32, #tpu.memory_space<vmem>>, vector<1x32xf32>
    %4 = vector.broadcast %3 : vector<1x32xf32> to vector<8x32xf32>
    %5 = arith.addf %2, %4 : vector<8x32xf32>
    %6 = math.tanh %5 : vector<8x32xf32>
    %c0_5 = arith.constant 0 : index
    %c0_6 = arith.constant 0 : index
    %7 = vector.load %arg4[%c0_5, %c0_6] : memref<32x32xf32, #tpu.memory_space<vmem>>, vector<32x32xf32>
    %cst_7 = arith.constant dense<0.000000e+00> : vector<8x32xf32>
    %8 = tpu.matmul %6, %7, %cst_7 {dimension_numbers = #tpu.dot_dimension_numbers<[1], [0], [0], [1], [0, 0, 1, 1], [], []>} : vector<8x32xf32>, vector<32x32xf32>, vector<8x32xf32> -> vector<8x32xf32>
    %c0_8 = arith.constant 0 : index
    %c0_9 = arith.constant 0 : index
    %9 = vector.load %arg5[%c0_8, %c0_9] : memref<1x32xf32, #tpu.memory_space<vmem>>, vector<1x32xf32>
    %10 = vector.broadcast %9 : vector<1x32xf32> to vector<8x32xf32>
    %11 = arith.addf %8, %10 : vector<8x32xf32>
    %12 = math.tanh %11 : vector<8x32xf32>
    %c0_10 = arith.constant 0 : index
    %c0_11 = arith.constant 0 : index
    %13 = vector.load %arg6[%c0_10, %c0_11] : memref<8x32xf32, #tpu.memory_space<vmem>>, vector<8x32xf32>
    tpu.vector_store %arg6[%c0_10, %c0_11], %12 {strides = array<i32>} : memref<8x32xf32, #tpu.memory_space<vmem>>, vector<8x32xf32>,
    return
  }
  func.func @transform_0(%arg0: i32) -> (i32, i32) {
    %c0_i32 = arith.constant 0 : i32
    %c0_i32_0 = arith.constant 0 : i32
    return %arg0, %c0_i32 : i32, i32
  }
  func.func @transform_1(%arg0: i32) -> (i32, i32) {
    %c0_i32 = arith.constant 0 : i32
    %c0_i32_0 = arith.constant 0 : i32
    %c0_i32_1 = arith.constant 0 : i32
    return %c0_i32, %c0_i32_0 : i32, i32
  }
  func.func @transform_2(%arg0: i32) -> (i32, i32) {
    %c0_i32 = arith.constant 0 : i32
    %c0_i32_0 = arith.constant 0 : i32
    %c0_i32_1 = arith.constant 0 : i32
    return %c0_i32, %c0_i32_0 : i32, i32
  }
  func.func @transform_3(%arg0: i32) -> (i32, i32) {
    %c0_i32 = arith.constant 0 : i32
    %c0_i32_0 = arith.constant 0 : i32
    %c0_i32_1 = arith.constant 0 : i32
    return %c0_i32, %c0_i32_0 : i32, i32
  }
  func.func @transform_4(%arg0: i32) -> (i32, i32) {
    %c0_i32 = arith.constant 0 : i32
    %c0_i32_0 = arith.constant 0 : i32
    %c0_i32_1 = arith.constant 0 : i32
    return %c0_i32, %c0_i32_0 : i32, i32
  }
  func.func @transform_5(%arg0: i32) -> (i32, i32) {
    %c0_i32 = arith.constant 0 : i32
    %c0_i32_0 = arith.constant 0 : i32
    return %arg0, %c0_i32 : i32, i32
  }
}

</mosaic_0001>

<llo_original>
// kernel: linear_tanh_forward.1
$region0: #{linear_tanh_forward.1}
  #allocation0 [shape = 'u32[]', space=smem, size = 0x4, offset = 0x4, fixed_abs, tag = 'smem constant byte address 0x4 - core index']
  #allocation1 [shape = 'u32[144,128]{1,0:T(1,128)}', space=vmem, size = 0x12000, scoped, tag = 'internal scratch']
  %s0 = inlined_call_operand.vmem [shape: f32[8,8], index: 0, kind: input, shape index: {}]
  %s1 = inlined_call_operand.vmem [shape: f32[8,32], index: 1, kind: input, shape index: {}]
  %s2 = inlined_call_operand.vmem [shape: f32[1,32], index: 2, kind: input, shape index: {}]
  %s3 = inlined_call_operand.hbm [shape: f32[32,32], index: 3, kind: input, shape index: {}]
  %s4 = inlined_call_operand.vmem [shape: f32[1,32], index: 4, kind: input, shape index: {}]
  %s5 = inlined_call_operand.vmem [shape: f32[8,32], index: 5, kind: output, shape index: {}]
  %s6 = sld [smem:[#allocation0]]
  $region34: #{linear_tanh_forward.1} parent=0
    _
  %s8 = ssub.s32 1, %s6
  %s9 = scalar_select 0, %s8, %s6
  $region1: #{linear_tanh_forward.1} parent=0
    #allocation2 [shape = 'u8[16384]{0}', space=vmem, size = 0x4000, scoped, tag = 'input window, operand 3, single buffered']
    #allocation3 [shape = 's32[1]{0}', space=sflag, size = 0x4, scoped, tag = 'scoped memory for linear_tanh_forward.1']
    %10 = vsyncpa [#allocation3], 0
    // Predicated region
    $region2: #{linear_tanh_forward.1} parent=1 // pred_check
      _
    $region3: #{linear_tanh_forward.1} parent=1 // pred_check_branch
      %12 = sbr.rel (0) target = $region5
    $region4: #{linear_tanh_forward.1} parent=1 // pred_region
      _
    $region5: #{linear_tanh_forward.1} parent=1 // pred_fallthru
      _
    // Predicated region
    $region6: #{linear_tanh_forward.1} parent=1 // pred_check
      _
    $region7: #{linear_tanh_forward.1} parent=1 // pred_check_branch
      %14 = sbr.rel (0) target = $region9
    $region8: #{linear_tanh_forward.1} parent=1 // pred_region
      _
    $region9: #{linear_tanh_forward.1} parent=1 // pred_fallthru
      _
    // Predicated region
    $region10: #{linear_tanh_forward.1} parent=1 // pred_check
      _
    $region11: #{linear_tanh_forward.1} parent=1 // pred_check_branch
      %16 = sbr.rel (0) target = $region13
    $region12: #{linear_tanh_forward.1} parent=1 // pred_region
      _
    $region13: #{linear_tanh_forward.1} parent=1 // pred_fallthru
      _
    // Predicated region
    $region14: #{linear_tanh_forward.1} parent=1 // pred_check
      _
    $region15: #{linear_tanh_forward.1} parent=1 // pred_check_branch
      %18 = sbr.rel (0) target = $region17
    $region16: #{linear_tanh_forward.1} parent=1 // pred_region
      %s20 = ssub.s32 512, 512
      %21 = vsyncadd [#allocation3], %s20
      %s22 = sshll.u32 [#allocation2], 4
      %s23 = int_to_ptr.vmem [resolvable:$true] %s22
      %28 = dma.hbm_to_vmem [thread:$0]  %s3, 512, %s23, [#allocation3], 128, 128, 8
    $region17: #{linear_tanh_forward.1} parent=1 // pred_fallthru
      _
    // Predicated region
    $region18: #{linear_tanh_forward.1} parent=1 // pred_check
      _
    $region19: #{linear_tanh_forward.1} parent=1 // pred_check_branch
      %30 = sbr.rel (0) target = $region21
    $region20: #{linear_tanh_forward.1} parent=1 // pred_region
      _
    $region21: #{linear_tanh_forward.1} parent=1 // pred_fallthru
      _
    // Predicated region
    $region22: #{linear_tanh_forward.1} parent=1 // pred_check
      _
    $region23: #{linear_tanh_forward.1} parent=1 // pred_check_branch
      %32 = sbr.rel (0) target = $region25
    $region24: #{linear_tanh_forward.1} parent=1 // pred_region
      %33 = dma.done [#allocation3], 512
    $region25: #{linear_tanh_forward.1} parent=1 // pred_fallthru
      _
    %v34 = vld [vmem:[%s0] sm:$0xff]
    %v35 = vld [vmem:[%s1] sm:$0xff]
    %v36 = vld [vmem:[%s2] sm:$0x1]
    %v38 = vlaneseq
    %v39 = vshrl.u32 %v38, 7
    %v40 = vsub.s32 0, %v39
    %v41 = vrot.slane %v36, %v40
    %vm43 = vcmask 64512
    %v45 = vsel %vm43, %v34, 0
    %47 = vmatprep.subr.mxu0 0.0
    %48 = vmatpush1.msra.mxu0 %v35
    %49 = vmatprep.subr.mxu0 0.0
    %50 = vmatpush1.msra.mxu0 0.0
    %51 = vmatprep.subr.mxu0 0.0
    %52 = vmatpush1.msra.mxu0 0.0
    %53 = vmatprep.subr.mxu0 0.0
    %54 = vmatpush1.msra.mxu0 0.0
    %55 = vmatprep.subr.mxu0 0.0
    %56 = vmatpush1.msra.mxu0 0.0
    %57 = vmatprep.subr.mxu0 0.0
    %58 = vmatpush1.msra.mxu0 0.0
    %59 = vmatprep.subr.mxu0 0.0
    %60 = vmatpush1.msra.mxu0 0.0
    %61 = vmatprep.subr.mxu0 0.0
    %62 = vmatpush1.msra.mxu0 0.0
    %63 = vmatprep.subr.mxu0 0.0
    %64 = vmatpush1.msra.mxu0 0.0
    %65 = vmatprep.subr.mxu0 0.0
    %66 = vmatpush1.msra.mxu0 0.0
    %67 = vmatprep.subr.mxu0 0.0
    %68 = vmatpush1.msra.mxu0 0.0
    %69 = vmatprep.subr.mxu0 0.0
    %70 = vmatpush1.msra.mxu0 0.0
    %71 = vmatprep.subr.mxu0 0.0
    %72 = vmatpush1.msra.mxu0 0.0
    %73 = vmatprep.subr.mxu0 0.0
    %74 = vmatpush1.msra.mxu0 0.0
    %75 = vmatprep.subr.mxu0 0.0
    %76 = vmatpush1.msra.mxu0 0.0
    %77 = vmatprep.subr.mxu0 0.0
    %78 = vmatpush1.msra.mxu0 0.0
    %79 = vmatprep.subr.mxu0 0.0
    %80 = vmatpush1.msra.mxu0 0.0
    %81 = vmatprep.subr.mxu0 0.0
    %82 = vmatpush1.msra.mxu0 0.0
    %83 = vmatprep.subr.mxu0 0.0
    %84 = vmatpush1.msra.mxu0 0.0
    %85 = vmatprep.subr.mxu0 0.0
    %86 = vmatpush1.msra.mxu0 0.0
    %87 = vmatprep.subr.mxu0 0.0
    %88 = vmatpush1.msra.mxu0 0.0
    %89 = vmatprep.subr.mxu0 0.0
    %90 = vmatpush1.msra.mxu0 0.0
    %91 = vmatprep.subr.mxu0 0.0
    %92 = vmatpush1.msra.mxu0 0.0
    %93 = vmatprep.subr.mxu0 0.0
    %94 = vmatpush1.msra.mxu0 0.0
    %95 = vmatprep.subr.mxu0 0.0
    %96 = vmatpush1.msra.mxu0 0.0
    %97 = vmatprep.subr.mxu0 0.0
    %98 = vmatpush1.msra.mxu0 0.0
    %99 = vmatprep.subr.mxu0 0.0
    %100 = vmatpush1.msra.mxu0 0.0
    %101 = vmatprep.subr.mxu0 0.0
    %102 = vmatpush1.msra.mxu0 0.0
    %103 = vmatprep.subr.mxu0 0.0
    %104 = vmatpush1.msra.mxu0 0.0
    %105 = vmatprep.subr.mxu0 0.0
    %106 = vmatpush1.msra.mxu0 0.0
    %107 = vmatprep.subr.mxu0 0.0
    %108 = vmatpush1.msra.mxu0 0.0
    %109 = vmatprep.subr.mxu0 0.0
    %110 = vmatpush1.msra.mxu0 0.0
    %111 = vmatprep.mubr.f32.mxu0 0.0
    %112 = vmatmul.mubr.f32.gmra.mrb[0].mxu0 %v45
    %v113 = vpop.f32.mrb[0].mxu0
    %v114 = vadd.f32 %v41, %v113
    %v115 = vpop.f32.mrb[0].mxu0
    %116 = vdwg.mxu0
    %v117 = vtanh.pop %v114
    %v118 = vld [vmem:[#allocation2] sm:$0xff]
    %v119 = vld [vmem:[#allocation2 + $0x8] sm:$0xff]
    %v120 = vld [vmem:[#allocation2 + $0x10] sm:$0xff]
    %v121 = vld [vmem:[#allocation2 + $0x18] sm:$0xff]
    %v122 = vld [vmem:[%s4] sm:$0x1]
    %v124 = vlaneseq
    %v125 = vshrl.u32 %v124, 7
    %v126 = vsub.s32 0, %v125
    %v127 = vrot.slane %v122, %v126
    %vm129 = vcmask 261120
    %v131 = vsel %vm129, %v117, 0
    %133 = vmatprep.subr.mxu0 0.0
    %134 = vmatpush1.msra.mxu0 %v118
    %135 = vmatprep.subr.mxu0 0.0
    %136 = vmatpush1.msra.mxu0 %v119
    %137 = vmatprep.subr.mxu0 0.0
    %138 = vmatpush1.msra.mxu0 %v120
    %139 = vmatprep.subr.mxu0 0.0
    %140 = vmatpush1.msra.mxu0 %v121
    %141 = vmatprep.subr.mxu0 0.0
    %142 = vmatpush1.msra.mxu0 0.0
    %143 = vmatprep.subr.mxu0 0.0
    %144 = vmatpush1.msra.mxu0 0.0
    %145 = vmatprep.subr.mxu0 0.0
    %146 = vmatpush1.msra.mxu0 0.0
    %147 = vmatprep.subr.mxu0 0.0
    %148 = vmatpush1.msra.mxu0 0.0
    %149 = vmatprep.subr.mxu0 0.0
    %150 = vmatpush1.msra.mxu0 0.0
    %151 = vmatprep.subr.mxu0 0.0
    %152 = vmatpush1.msra.mxu0 0.0
    %153 = vmatprep.subr.mxu0 0.0
    %154 = vmatpush1.msra.mxu0 0.0
    %155 = vmatprep.subr.mxu0 0.0
    %156 = vmatpush1.msra.mxu0 0.0
    %157 = vmatprep.subr.mxu0 0.0
    %158 = vmatpush1.msra.mxu0 0.0
    %159 = vmatprep.subr.mxu0 0.0
    %160 = vmatpush1.msra.mxu0 0.0
    %161 = vmatprep.subr.mxu0 0.0
    %162 = vmatpush1.msra.mxu0 0.0
    %163 = vmatprep.subr.mxu0 0.0
    %164 = vmatpush1.msra.mxu0 0.0
    %165 = vmatprep.subr.mxu0 0.0
    %166 = vmatpush1.msra.mxu0 0.0
    %167 = vmatprep.subr.mxu0 0.0
    %168 = vmatpush1.msra.mxu0 0.0
    %169 = vmatprep.subr.mxu0 0.0
    %170 = vmatpush1.msra.mxu0 0.0
    %171 = vmatprep.subr.mxu0 0.0
    %172 = vmatpush1.msra.mxu0 0.0
    %173 = vmatprep.subr.mxu0 0.0
    %174 = vmatpush1.msra.mxu0 0.0
    %175 = vmatprep.subr.mxu0 0.0
    %176 = vmatpush1.msra.mxu0 0.0
    %177 = vmatprep.subr.mxu0 0.0
    %178 = vmatpush1.msra.mxu0 0.0
    %179 = vmatprep.subr.mxu0 0.0
    %180 = vmatpush1.msra.mxu0 0.0
    %181 = vmatprep.subr.mxu0 0.0
    %182 = vmatpush1.msra.mxu0 0.0
    %183 = vmatprep.subr.mxu0 0.0
    %184 = vmatpush1.msra.mxu0 0.0
    %185 = vmatprep.subr.mxu0 0.0
    %186 = vmatpush1.msra.mxu0 0.0
    %187 = vmatprep.subr.mxu0 0.0
    %188 = vmatpush1.msra.mxu0 0.0
    %189 = vmatprep.subr.mxu0 0.0
    %190 = vmatpush1.msra.mxu0 0.0
    %191 = vmatprep.subr.mxu0 0.0
    %192 = vmatpush1.msra.mxu0 0.0
    %193 = vmatprep.subr.mxu0 0.0
    %194 = vmatpush1.msra.mxu0 0.0
    %195 = vmatprep.subr.mxu0 0.0
    %196 = vmatpush1.msra.mxu0 0.0
    %197 = vmatprep.mubr.f32.mxu0 0.0
    %198 = vmatmul.mubr.f32.gmra.mrb[0].mxu0 %v131
    %v199 = vpop.f32.mrb[0].mxu0
    %v200 = vadd.f32 %v127, %v199
    %v201 = vpop.f32.mrb[0].mxu0
    %202 = vdwg.mxu0
    %v203 = vtanh.pop %v200
    %204 = vst.msk [vmem:[%s5] sm:$0xff] %vm129, %v203
    // Predicated region
    $region26: #{linear_tanh_forward.1} parent=1 // pred_check
      _
    $region27: #{linear_tanh_forward.1} parent=1 // pred_check_branch
      %206 = sbr.rel (0) target = $region29
    $region28: #{linear_tanh_forward.1} parent=1 // pred_region
      _
    $region29: #{linear_tanh_forward.1} parent=1 // pred_fallthru
      _
    // Predicated region
    $region30: #{linear_tanh_forward.1} parent=1 // pred_check
      _
    $region31: #{linear_tanh_forward.1} parent=1 // pred_check_branch
      %208 = sbr.rel (0) target = $region33
    $region32: #{linear_tanh_forward.1} parent=1 // pred_region
      _
    $region33: #{linear_tanh_forward.1} parent=1 // pred_fallthru
      _
    %209 = vsyncpa [#allocation3], 1

</llo_original>
